<compile_context>
chip_gen: v5e
topology: v5e:2x2
jax: 0.10.0
libtpu: 0.0.40
codegen_flags: <defaults>
</compile_context>

<pallas_src>
import jax
import jax.numpy as jnp
from jax.experimental import pallas as pl
from jax.experimental.pallas import tpu as pltpu


# Switch off the gridless (everything-pinned-in-VMEM) path once x exceeds this.
_GRIDLESS_MAX_X_BYTES = 2 * 1024 * 1024    # 2 MiB: safe under v5e's 16 MiB scoped VMEM
_DEFAULT_TILE_TARGET = 16 * 1024           # rows per batch tile for the streamed path


def _mlp_kernel(x_ref, w1t_ref, b1_ref, w2_ref, b2_ref, o_ref):
    """relu(x @ w1 + b1) @ w2 + b2 in transposed (lane-dense) orientation.

    x_ref:   [TB, D_in]  batch tile (streamed)
    w1t_ref: [H, D_in]   fc1 weight, pre-transposed (resident)
    b1_ref:  [H, 1]      fc1 bias as a column (resident)
    w2_ref:  [H, 1]      output_layer weight as a column (resident)
    b2_ref:  [1, 1]      output_layer bias (resident)
    o_ref:   [1, TB]     lane-dense output row (unmasked stores)
    """
    # fc1 (MXU, f32 accumulate): NT contraction keeps the batch on lanes.
    #   h_T[h, b] = sum_d w1t[h, d] * x[b, d]  ->  [H, TB]
    h_t = jax.lax.dot_general(
        w1t_ref[...], x_ref[...],
        dimension_numbers=(((1,), (1,)), ((), ())),
        preferred_element_type=jnp.float32,
    )
    h_t = jnp.maximum(h_t + b1_ref[...], 0.0)
    # output_layer (N=1): VPU multiply + sublane reduction (XLU) — a second MXU
    # push for a single output column would waste the systolic array; result is
    # already [1, TB] lane-dense, so no final transpose and no masked store.
    y_t = jnp.sum(h_t * w2_ref[...], axis=0, keepdims=True) + b2_ref[...]
    o_ref[...] = y_t.astype(o_ref.dtype)


def _pick_block_b(B, target):
    """Largest multiple-of-128 divisor of B that is <= target and leaves >= 2
    grid steps (so both v7x TensorCores get work). None if no such divisor."""
    best = None
    upper = min(B // 2, target)
    for cand in range(128, upper + 1, 128):
        if B % cand == 0:
            best = cand
    return best


def regression_model_forward(x, w1, b1, w2, b2, *, block_b=None,
                             tile_target=_DEFAULT_TILE_TARGET):
    """Forward pass: relu(x @ w1 + b1) @ w2 + b2.

    x: [B, D_in]; w1: [D_in, H]; b1: [H]; w2: [H, 1]; b2: [1]  ->  [B, 1].
    block_b=None auto-dispatches between the gridless (tiny-batch) path and the
    streamed lane-dense tiled path.
    """
    B, D_in = x.shape
    H = w1.shape[1]

    # Tiny parameter reshapes; done once outside the kernel (weights are ~2 KB).
    w1t = jnp.transpose(w1)         # [H, D_in]
    b1_col = b1.reshape(H, 1)
    w2_col = w2.reshape(H, 1)
    b2_2d = b2.reshape(1, 1)

    if block_b is None:
        x_bytes = B * D_in * x.dtype.itemsize
        if x_bytes <= _GRIDLESS_MAX_X_BYTES:
            block_b = B                       # tiny / latency-bound: gridless
        else:
            block_b = _pick_block_b(B, tile_target)
            if block_b is None:
                # TODO(synk): large batch not divisible by 128 — no ragged/masked
                # tiling path; falling back to the gridless kernel.
                block_b = B
    block_b = min(block_b, B)

    out_shape = jax.ShapeDtypeStruct((1, B), x.dtype)

    if block_b == B:
        # Gridless path: no index_map plumbing, no pipeline prologue/epilogue;
        # every operand pinned in VMEM for the single invocation.
        out = pl.pallas_call(
            _mlp_kernel,
            out_shape=out_shape,
            in_specs=[pl.BlockSpec(memory_space=pltpu.MemorySpace.VMEM)] * 5,
            out_specs=pl.BlockSpec(memory_space=pltpu.MemorySpace.VMEM),
        )(x, w1t, b1_col, w2_col, b2_2d)
        return out.reshape(B, 1)

    if B % block_b != 0:
        raise ValueError(f"block_b={block_b} must divide B={B}")
    if block_b % 128 != 0:
        raise ValueError(f"block_b={block_b} must be a multiple of 128 "
                         "(lane-dense output block)")

    grid = (B // block_b,)
    out = pl.pallas_call(
        _mlp_kernel,
        out_shape=out_shape,
        grid=grid,
        in_specs=[
            pl.BlockSpec((block_b, D_in), lambda i: (i, 0)),   # x: streamed, double-buffered
            pl.BlockSpec((H, D_in), lambda i: (0, 0)),         # w1t: resident
            pl.BlockSpec((H, 1), lambda i: (0, 0)),            # b1:  resident
            pl.BlockSpec((H, 1), lambda i: (0, 0)),            # w2:  resident
            pl.BlockSpec((1, 1), lambda i: (0, 0)),            # b2:  resident
        ],
        out_specs=pl.BlockSpec((1, block_b), lambda i: (0, i)),  # lane-dense output
        compiler_params=pltpu.CompilerParams(
            dimension_semantics=("parallel",),   # shards batch tiles across TCs on v7x
        ),
    )(x, w1t, b1_col, w2_col, b2_2d)
    # (1, B) -> (B, 1): contiguous, metadata-only reshape.
    return out.reshape(B, 1)


if __name__ == "__main__":
    # Small shapes consistent with the module: batch=8, input_size=16, hidden=32.
    B, D_in, H = 8, 16, 32

    key = jax.random.PRNGKey(0)
    kx, kw1, kb1, kw2, kb2 = jax.random.split(key, 5)

    x = jax.random.normal(kx, (B, D_in), dtype=jnp.float32)
    # Deterministic parameter init (PyTorch-style uniform bounds, synthetic).
    bound1 = 1.0 / (D_in ** 0.5)
    w1 = jax.random.uniform(kw1, (D_in, H), jnp.float32, -bound1, bound1)
    b1 = jax.random.uniform(kb1, (H,), jnp.float32, -bound1, bound1)
    bound2 = 1.0 / (H ** 0.5)
    w2 = jax.random.uniform(kw2, (H, 1), jnp.float32, -bound2, bound2)
    b2 = jax.random.uniform(kb2, (1,), jnp.float32, -bound2, bound2)

    def ref_fn(xx):
        return jnp.maximum(xx @ w1 + b1, 0.0) @ w2 + b2

    # Path 1: tiny batch -> gridless single-shot kernel.
    out = jax.block_until_ready(regression_model_forward(x, w1, b1, w2, b2))
    assert out.shape == (B, 1)
    assert jnp.allclose(out, ref_fn(x), atol=2e-5, rtol=2e-5)

    # Path 2: large batch -> auto-dispatched streamed path (lane-dense output,
    # big tiles, >= 2 grid steps for the two v7x TensorCores).
    Bt = 65536
    xt = jax.random.normal(jax.random.PRNGKey(1), (Bt, D_in), dtype=jnp.float32)
    out_t = jax.block_until_ready(regression_model_forward(xt, w1, b1, w2, b2))
    assert out_t.shape == (Bt, 1)
    assert jnp.allclose(out_t, ref_fn(xt), atol=2e-5, rtol=2e-5)

    # Path 3: explicit tile-size override still works.
    out_e = jax.block_until_ready(
        regression_model_forward(xt, w1, b1, w2, b2, block_b=8192))
    assert out_e.shape == (Bt, 1)
    assert jnp.allclose(out_e, out_t, atol=1e-6, rtol=1e-6)

    print("KERNEL_OK")
</pallas_src>

<mosaic_0001>
module attributes {stable_mosaic.version = 11 : i64} {
  func.func @_mlp_kernel(%arg0: memref<8x16xf32, #tpu.memory_space<vmem>>, %arg1: memref<32x16xf32, #tpu.memory_space<vmem>>, %arg2: memref<32x1xf32, #tpu.memory_space<vmem>>, %arg3: memref<32x1xf32, #tpu.memory_space<vmem>>, %arg4: memref<1x1xf32, #tpu.memory_space<vmem>>, %arg5: memref<1x8xf32, #tpu.memory_space<vmem>>) attributes {dimension_semantics = [], scalar_prefetch = 0 : i64, scratch_operands = 0 : i64, tpu.core_type = #tpu.core_type<tc>} {
    %c0 = arith.constant 0 : index
    %c0_0 = arith.constant 0 : index
    %0 = vector.load %arg1[%c0, %c0_0] : memref<32x16xf32, #tpu.memory_space<vmem>>, vector<32x16xf32>
    %c0_1 = arith.constant 0 : index
    %c0_2 = arith.constant 0 : index
    %1 = vector.load %arg0[%c0_1, %c0_2] : memref<8x16xf32, #tpu.memory_space<vmem>>, vector<8x16xf32>
    %cst = arith.constant dense<0.000000e+00> : vector<32x8xf32>
    %2 = tpu.matmul %0, %1, %cst {dimension_numbers = #tpu.dot_dimension_numbers<[1], [1], [0], [0], [0, 0, 1, 0], [], []>} : vector<32x16xf32>, vector<8x16xf32>, vector<32x8xf32> -> vector<32x8xf32>
    %c0_3 = arith.constant 0 : index
    %c0_4 = arith.constant 0 : index
    %3 = vector.load %arg2[%c0_3, %c0_4] : memref<32x1xf32, #tpu.memory_space<vmem>>, vector<32x1xf32>
    %4 = vector.broadcast %3 : vector<32x1xf32> to vector<32x8xf32>
    %5 = arith.addf %2, %4 : vector<32x8xf32>
    %cst_5 = arith.constant 0.000000e+00 : f32
    %6 = vector.broadcast %cst_5 : f32 to vector<32x8xf32>
    %7 = arith.maximumf %5, %6 : vector<32x8xf32>
    %c0_6 = arith.constant 0 : index
    %c0_7 = arith.constant 0 : index
    %8 = vector.load %arg3[%c0_6, %c0_7] : memref<32x1xf32, #tpu.memory_space<vmem>>, vector<32x1xf32>
    %9 = vector.broadcast %8 : vector<32x1xf32> to vector<32x8xf32>
    %10 = arith.mulf %7, %9 : vector<32x8xf32>
    %cst_8 = arith.constant dense<0.000000e+00> : vector<8xf32>
    %11 = vector.multi_reduction <add>, %10, %cst_8 [0] : vector<32x8xf32> to vector<8xf32>
    %12 = vector.shape_cast %11 : vector<8xf32> to vector<1x8xf32>
    %c0_9 = arith.constant 0 : index
    %c0_10 = arith.constant 0 : index
    %13 = vector.load %arg4[%c0_9, %c0_10] : memref<1x1xf32, #tpu.memory_space<vmem>>, vector<1x1xf32>
    %14 = vector.broadcast %13 : vector<1x1xf32> to vector<1x8xf32>
    %15 = arith.addf %12, %14 : vector<1x8xf32>
    %c0_11 = arith.constant 0 : index
    %c0_12 = arith.constant 0 : index
    %16 = vector.load %arg5[%c0_11, %c0_12] : memref<1x8xf32, #tpu.memory_space<vmem>>, vector<1x8xf32>
    tpu.vector_store %arg5[%c0_11, %c0_12], %15 {strides = array<i32>} : memref<1x8xf32, #tpu.memory_space<vmem>>, vector<1x8xf32>,
    return
  }
}

</mosaic_0001>

<llo_original>
// kernel: tpu_custom_call.1
$region0: #{tpu_custom_call.1}
  #allocation0 [shape = 'u32[]', space=smem, size = 0x4, offset = 0x4, fixed_abs, tag = 'smem constant byte address 0x4 - core index']
  #allocation1 [shape = 'u32[72,128]{1,0:T(1,128)}', space=vmem, size = 0x9000, scoped, tag = 'internal scratch']
  #allocation2 [shape = 'f32[1,1]{1,0:T(1,128)S(1)}', space=vmem, size = 0x200, scoped, tag = 'scoped memory for tpu_custom_call.1']
  %s0 = inlined_call_operand.vmem [shape: f32[8,16], index: 0, kind: input, shape index: {}]
  %s1 = inlined_call_operand.vmem [shape: f32[32,16], index: 1, kind: input, shape index: {}]
  %s2 = inlined_call_operand.vmem [shape: f32[32,1], index: 2, kind: input, shape index: {}]
  %s3 = inlined_call_operand.vmem [shape: f32[32,1], index: 3, kind: input, shape index: {}]
  %s4 = inlined_call_operand.<no memory space> [shape: f32[1,1], index: 4, kind: input, shape index: {}]
  %s5 = inlined_call_operand.hbm [shape: f32[1,8], index: 5, kind: output, shape index: {}]
  %s6 = sld [smem:[#allocation0]]
  $region30: #{tpu_custom_call.1} parent=0
    _
  %s8 = ssub.s32 1, %s6
  %s9 = scalar_select 0, %s8, %s6
  %v10 = vstv %s4
  %11 = vst [vmem:[#allocation2] sm:$0x1] %v10
  $region1: #{tpu_custom_call.1} parent=0
    #allocation3 [shape = 'u8[512]{0}', space=vmem, size = 0x400, scoped, tag = 'output window, operand 0, single buffered']
    #allocation4 [shape = 's32[1]{0}', space=sflag, size = 0x4, scoped, tag = 'scoped memory for tpu_custom_call.1']
    %12 = vsyncpa [#allocation4], 0
    // Predicated region
    $region2: #{tpu_custom_call.1} parent=1 // pred_check
      _
    $region3: #{tpu_custom_call.1} parent=1 // pred_check_branch
      %14 = sbr.rel (0) target = $region5
    $region4: #{tpu_custom_call.1} parent=1 // pred_region
      _
    $region5: #{tpu_custom_call.1} parent=1 // pred_fallthru
      _
    // Predicated region
    $region6: #{tpu_custom_call.1} parent=1 // pred_check
      _
    $region7: #{tpu_custom_call.1} parent=1 // pred_check_branch
      %16 = sbr.rel (0) target = $region9
    $region8: #{tpu_custom_call.1} parent=1 // pred_region
      _
    $region9: #{tpu_custom_call.1} parent=1 // pred_fallthru
      _
    // Predicated region
    $region10: #{tpu_custom_call.1} parent=1 // pred_check
      _
    $region11: #{tpu_custom_call.1} parent=1 // pred_check_branch
      %18 = sbr.rel (0) target = $region13
    $region12: #{tpu_custom_call.1} parent=1 // pred_region
      _
    $region13: #{tpu_custom_call.1} parent=1 // pred_fallthru
      _
    // Predicated region
    $region14: #{tpu_custom_call.1} parent=1 // pred_check
      _
    $region15: #{tpu_custom_call.1} parent=1 // pred_check_branch
      %20 = sbr.rel (0) target = $region17
    $region16: #{tpu_custom_call.1} parent=1 // pred_region
      _
    $region17: #{tpu_custom_call.1} parent=1 // pred_fallthru
      _
    // Predicated region
    $region18: #{tpu_custom_call.1} parent=1 // pred_check
      _
    $region19: #{tpu_custom_call.1} parent=1 // pred_check_branch
      %22 = sbr.rel (0) target = $region21
    $region20: #{tpu_custom_call.1} parent=1 // pred_region
      _
    $region21: #{tpu_custom_call.1} parent=1 // pred_fallthru
      _
    %v23 = vld [vmem:[%s1] sm:$0xff]
    %v24 = vld [vmem:[%s1 + $0x8] sm:$0xff]
    %v25 = vld [vmem:[%s1 + $0x10] sm:$0xff]
    %v26 = vld [vmem:[%s1 + $0x18] sm:$0xff]
    %v27 = vld [vmem:[%s0] sm:$0xff]
    %v28 = vld [vmem:[%s2] sm:$0xff]
    %v29 = vld [vmem:[%s2 + $0x8] sm:$0xff]
    %v30 = vld [vmem:[%s2 + $0x10] sm:$0xff]
    %v31 = vld [vmem:[%s2 + $0x18] sm:$0xff]
    %33 = vset.pattern.permute.xlu0 0
    %34 = vperm.xlu0 %33, %v28
    %v35 = vpop.permute.xlu0 %34
    %38 = vset.pattern.permute.xlu0 0
    %39 = vperm.xlu0 %38, %v29
    %v40 = vpop.permute.xlu0 %39
    %43 = vset.pattern.permute.xlu0 0
    %44 = vperm.xlu0 %43, %v30
    %v45 = vpop.permute.xlu0 %44
    %48 = vset.pattern.permute.xlu0 0
    %49 = vperm.xlu0 %48, %v31
    %v50 = vpop.permute.xlu0 %49
    %vm52 = vcmask 130048
    %v54 = vsel %vm52, %v23, 0
    %v57 = vsel %vm52, %v24, 0
    %v60 = vsel %vm52, %v25, 0
    %v63 = vsel %vm52, %v26, 0
    %v66 = vsel %vm52, %v27, 0
    %68 = vmatpush.xpose.msra.mxu0 0.0
    %69 = vmatpush.xpose.msra.mxu0 0.0
    %70 = vmatpush.xpose.msra.mxu0 0.0
    %71 = vmatpush.xpose.msra.mxu0 0.0
    %72 = vmatpush.xpose.msra.mxu0 0.0
    %73 = vmatpush.xpose.msra.mxu0 0.0
    %74 = vmatpush.xpose.msra.mxu0 0.0
    %75 = vmatpush.xpose.msra.mxu0 0.0
    %76 = vmatpush.xpose.msra.mxu0 0.0
    %77 = vmatpush.xpose.msra.mxu0 0.0
    %78 = vmatpush.xpose.msra.mxu0 0.0
    %79 = vmatpush.xpose.msra.mxu0 0.0
    %80 = vmatpush.xpose.msra.mxu0 0.0
    %81 = vmatpush.xpose.msra.mxu0 0.0
    %82 = vmatpush.xpose.msra.mxu0 0.0
    %83 = vmatpush.xpose.msra.mxu0 %v66
    %84 = vmatmul.f32.gmra.mxu0 %v54
    %v85 = vpop.f32.mrf.mxu0
    %v86 = vadd.f32 %v35, %v85
    %87 = vmatmul.f32.gmra.mxu0 %v57
    %v88 = vpop.f32.mrf.mxu0
    %v89 = vadd.f32 %v40, %v88
    %90 = vmatmul.f32.gmra.mxu0 %v60
    %v91 = vpop.f32.mrf.mxu0
    %v92 = vadd.f32 %v45, %v91
    %93 = vmatmul.f32.gmra.mxu0 %v63
    %v94 = vpop.f32.mrf.mxu0
    %v95 = vadd.f32 %v50, %v94
    %96 = vdwg.mxu0
    %v97 = vmax.f32 %v86, 0.0
    %v98 = vmax.f32 %v89, 0.0
    %v99 = vmax.f32 %v92, 0.0
    %v100 = vmax.f32 %v95, 0.0
    %v101 = vld [vmem:[%s3] sm:$0xff]
    %v102 = vld [vmem:[%s3 + $0x8] sm:$0xff]
    %v103 = vld [vmem:[%s3 + $0x10] sm:$0xff]
    %v104 = vld [vmem:[%s3 + $0x18] sm:$0xff]
    %106 = vset.pattern.permute.xlu0 0
    %107 = vperm.xlu0 %106, %v101
    %v108 = vpop.permute.xlu0 %107
    %111 = vset.pattern.permute.xlu0 0
    %112 = vperm.xlu0 %111, %v102
    %v113 = vpop.permute.xlu0 %112
    %116 = vset.pattern.permute.xlu0 0
    %117 = vperm.xlu0 %116, %v103
    %v118 = vpop.permute.xlu0 %117
    %121 = vset.pattern.permute.xlu0 0
    %122 = vperm.xlu0 %121, %v104
    %v123 = vpop.permute.xlu0 %122
    %v125 = vmul.f32 %v97, %v108
    %v126 = vmul.f32 %v98, %v113
    %v127 = vmul.f32 %v99, %v118
    %v128 = vmul.f32 %v100, %v123
    %vm129 = vcmask 64512
    %v130 = vsel %vm129, %v125, 0.0
    %v131 = vsel %vm129, %v126, 0.0
    %v132 = vadd.f32 %v130, %v131
    %v133 = vsel %vm129, %v127, 0.0
    %v134 = vadd.f32 %v132, %v133
    %v135 = vsel %vm129, %v128, 0.0
    %v136 = vadd.f32 %v134, %v135
    %v137 = vrot.slane %v136, 4
    %v138 = vadd.f32 %v136, %v137
    %v139 = vrot.slane %v138, 2
    %v140 = vadd.f32 %v138, %v139
    %v141 = vrot.slane %v140, 1
    %v142 = vadd.f32 %v140, %v141
    %v143 = vld [vmem:[#allocation2] sm:$0x1]
    %145 = vset.pattern.permute.xlu0 0
    %146 = vperm.xlu0 %145, %v143
    %v147 = vpop.permute.xlu0 %146
    %v149 = vperm.slane %v147, 0
    %v150 = vadd.f32 %v142, %v149
    %vm151 = vcmask 57344
    %152 = vst.msk [vmem:[#allocation3] sm:$0x1] %vm151, %v150
    // Predicated region
    $region22: #{tpu_custom_call.1} parent=1 // pred_check
      _
    $region23: #{tpu_custom_call.1} parent=1 // pred_check_branch
      %154 = sbr.rel (0) target = $region25
    $region24: #{tpu_custom_call.1} parent=1 // pred_region
      %156 = vsyncadd [#allocation4], 0
      %s158 = sshll.u32 [#allocation3], 4
      %s159 = int_to_ptr.vmem [resolvable:$true] %s158
      %s160 = sshll.u32 %s5, 4
      %s161 = int_to_ptr.hbm [resolvable:$true] %s160
      %163 = dma.vmem_to_hbm [thread:$0]  %s159, 16, %s161, [#allocation4]
    $region25: #{tpu_custom_call.1} parent=1 // pred_fallthru
      _
    // Predicated region
    $region26: #{tpu_custom_call.1} parent=1 // pred_check
      _
    $region27: #{tpu_custom_call.1} parent=1 // pred_check_branch
      %165 = sbr.rel (0) target = $region29
    $region28: #{tpu_custom_call.1} parent=1 // pred_region
      %167 = dma.done [#allocation4], 16
    $region29: #{tpu_custom_call.1} parent=1 // pred_fallthru
      _
    %168 = vsyncpa [#allocation4], 1

</llo_original>
